<compile_context>
chip_gen: v7x
topology: tpu7x:2x2x1
jax: 0.10.0
libtpu: 0.0.40
codegen_flags: <defaults>
</compile_context>

<pallas_src>
import functools

import jax
import jax.numpy as jnp
from jax.experimental import pallas as pl
from jax.experimental.pallas import tpu as pltpu


def _mqa_kernel(h_ref, wq_ref, wkv_ref, wo_ref, gamma_ref, beta_ref, out_ref,
                kv_ref, vec_ref, *, n_head, d_head, q_tile, eps, cache_kv):
    # h_ref  : (S, D)            full-sequence rows of h for the current batch element
    # wq_ref : (D, H*dh)         all-head Wq, softmax scale folded in
    # wkv_ref: (D, 2*dh)         fused [Wk | Wv]
    # wo_ref : (H*dh, D)         Wo^T
    # out_ref: (TQ, D)
    # kv_ref : (S, 2*dh)  VMEM   K|V cache (persists across the qi grid axis)
    # vec_ref: (TQ, H*dh) VMEM   per-head PV results (attn_vec, head-major lanes)
    cdt = h_ref.dtype                     # compute dtype, chosen once by the wrapper
    qi = pl.program_id(1)

    # --- shared multi-query K/V projection: one fused [S, D] @ [D, 2*dh] matmul ---
    def project_kv():
        kv = jnp.dot(h_ref[...], wkv_ref[...], preferred_element_type=jnp.float32)
        kv_ref[...] = kv.astype(kv_ref.dtype)

    if cache_kv:
        @pl.when(qi == 0)                 # K/V depend only on b -> compute once per batch
        def _():
            project_kv()
    else:
        project_kv()

    k = kv_ref[:, :d_head]                # [S, dh]
    v = kv_ref[:, d_head:]                # [S, dh]

    # Query rows for this tile, sliced from the already-resident full-seq block.
    q_start = pl.multiple_of(qi * q_tile, q_tile)
    hq = h_ref[pl.ds(q_start, q_tile), :]                                   # [TQ, D]

    # All heads' queries in one wide MXU matmul (N = H*dh instead of N = dh per head).
    q_all = jnp.dot(hq, wq_ref[...], preferred_element_type=jnp.float32).astype(cdt)

    # Unrolled head loop: head n's exp (EUP) overlaps head n+1's matmuls (MXU).
    for n in range(n_head):
        qn = q_all[:, n * d_head:(n + 1) * d_head]                          # [TQ, dh]
        # scores q_i . k_j  -- NT matmul (contract last dims, no k.T); scale is in Wq
        s = jax.lax.dot_general(qn, k, (((1,), (1,)), ((), ())),
                                preferred_element_type=jnp.float32)         # [TQ, S]
        m = jnp.max(s, axis=-1, keepdims=True)
        p = jnp.exp(s - m)                                  # un-normalized probabilities
        l = jnp.sum(p, axis=-1, keepdims=True)              # [TQ, 1]
        # TODO(synk): dropatt / attn_mask / mems paths not implemented (eval, mems=None).
        hv = jnp.dot(p.astype(cdt), v, preferred_element_type=jnp.float32)  # [TQ, dh]
        hv = hv / l                                         # normalize AFTER PV matmul
        vec_ref[:, n * d_head:(n + 1) * d_head] = hv.astype(vec_ref.dtype)

    # One fused output projection: contraction K = H*dh (full MXU depth).
    attn_out = jnp.dot(vec_ref[...], wo_ref[...], preferred_element_type=jnp.float32)

    # TODO(synk): dropout on attn_out is identity (eval mode).
    # Residual + post-LayerNorm (pre_lnorm=False), all in f32.
    x = hq.astype(jnp.float32) + attn_out
    mu = jnp.mean(x, axis=-1, keepdims=True)
    xc = x - mu
    var = jnp.mean(xc * xc, axis=-1, keepdims=True)
    y = xc * jax.lax.rsqrt(var + eps)
    y = y * gamma_ref[...].astype(jnp.float32) + beta_ref[...].astype(jnp.float32)
    out_ref[...] = y.astype(out_ref.dtype)


def _estimate_vmem_bytes(S, D, q_tile, n_head, d_head, cdt_bytes, out_bytes, n_buf):
    """Rough VMEM footprint of one grid step (blocks + scratch + working temps)."""
    hdh = n_head * d_head
    in_blocks = (S * D + D * hdh + D * 2 * d_head + hdh * D) * cdt_bytes * n_buf
    ln_params = 2 * D * 4 * n_buf
    out_blocks = 2 * q_tile * D * out_bytes
    scratch = (S * 2 * d_head + q_tile * hdh) * cdt_bytes
    working = (2 * q_tile * S + q_tile * hdh + 4 * q_tile * D) * 4
    return int((in_blocks + ln_params + out_blocks + scratch + working) * 1.25)


def multi_query_attn(h_sbd, wq, wkv, wo, gamma, beta, *, n_head, d_head,
                     eps=1e-5, q_tile=None, compute_dtype=None,
                     single_buffer_invariants=False, vmem_limit_bytes=None):
    """MultiQueryAttn forward.  h_sbd: [S, B, D] (PyTorch 'ibd' layout) -> [S, B, D].

    compute_dtype: MXU operand dtype (e.g. jnp.bfloat16); None keeps h's dtype.
    single_buffer_invariants: drop double-buffering on the big resident inputs (v7x).
    """
    S, B, D = h_sbd.shape
    out_dtype = h_sbd.dtype
    cdt = jnp.dtype(compute_dtype) if compute_dtype is not None else jnp.dtype(out_dtype)
    scale = 1.0 / (d_head ** 0.5)
    hdh = n_head * d_head

    # --- one-time parameter transforms (wrapper-side, not per grid step) ---
    wq_t = (wq.astype(jnp.float32) * scale).T.astype(cdt)      # [D, H*dh], scale folded
    wkv_t = jnp.transpose(wkv).astype(cdt)                     # [D, 2*dh]  (K cols first)
    wo_t = jnp.transpose(wo).astype(cdt)                       # [H*dh, D]
    gamma2 = gamma.reshape(1, D).astype(jnp.float32)
    beta2 = beta.reshape(1, D).astype(jnp.float32)

    # [S,B,D] -> [B,S,D], cast ONCE to the compute dtype (bf16 path halves HBM traffic).
    h_bsd = jnp.transpose(h_sbd, (1, 0, 2)).astype(cdt)

    # --- query tiling ---
    sub = 16 if cdt.itemsize < 4 else 8          # sublane packing granule
    if q_tile is None:
        q_tile = 256                             # bump to 512 on v6e if VMEM allows
    q_tile = min(q_tile, S)
    if q_tile != S:
        # Largest multiple of `sub` that divides S and is <= the requested tile
        # (avoids the silent fall-back to a full [S, S] score working set).
        cand = (q_tile // sub) * sub
        while cand >= sub and S % cand != 0:
            cand -= sub
        q_tile = cand if cand >= sub else S
    nq = S // q_tile

    # K/V caching across qi needs qi sequential ("arbitrary").  With B == 1 keep qi
    # "parallel" (both v7x TensorCores get work) and simply recompute K/V per tile.
    cache_kv = (nq > 1) and (B > 1)
    qi_sem = "arbitrary" if cache_kv else "parallel"

    kernel = functools.partial(_mqa_kernel, n_head=n_head, d_head=d_head,
                               q_tile=q_tile, eps=eps, cache_kv=cache_kv)

    if vmem_limit_bytes is None:
        est = _estimate_vmem_bytes(S, D, q_tile, n_head, d_head, cdt.itemsize,
                                   jnp.dtype(out_dtype).itemsize,
                                   1 if single_buffer_invariants else 2)
        # Never below the default scoped limit; keep under physical VMEM on all gens
        # (callers targeting v7x with very long S should also set single_buffer_invariants).
        vmem_limit_bytes = int(min(max(est, 32 * 1024 * 1024), 100 * 1024 * 1024))

    def big_spec(shape, index_map):
        if single_buffer_invariants:             # v7x: reclaim VMEM on resident inputs
            return pl.BlockSpec(shape, index_map, pipeline_mode=pl.Buffered(1))
        return pl.BlockSpec(shape, index_map)

    out_bsd = pl.pallas_call(
        kernel,
        out_shape=jax.ShapeDtypeStruct((B, S, D), out_dtype),
        grid_spec=pltpu.PrefetchScalarGridSpec(
            num_scalar_prefetch=0,
            grid=(B, nq),   # qi inner: full-seq h block / weights / KV cache stay resident
            in_specs=[
                big_spec((None, S, D), lambda b, qi: (b, 0, 0)),     # h (full seq per batch)
                big_spec((D, hdh), lambda b, qi: (0, 0)),            # Wq   (scale folded)
                big_spec((D, 2 * d_head), lambda b, qi: (0, 0)),     # Wkv  (K | V fused)
                big_spec((hdh, D), lambda b, qi: (0, 0)),            # Wo^T
                big_spec((1, D), lambda b, qi: (0, 0)),              # gamma
                big_spec((1, D), lambda b, qi: (0, 0)),              # beta
            ],
            out_specs=pl.BlockSpec((None, q_tile, D), lambda b, qi: (b, qi, 0)),
            scratch_shapes=[
                pltpu.VMEM((S, 2 * d_head), cdt),    # cached K|V for the current batch
                pltpu.VMEM((q_tile, hdh), cdt),      # per-head PV results (attn_vec)
            ],
        ),
        compiler_params=pltpu.CompilerParams(
            dimension_semantics=("parallel", qi_sem),
            vmem_limit_bytes=vmem_limit_bytes),
    )(h_bsd, wq_t, wkv_t, wo_t, gamma2, beta2)

    return jnp.transpose(out_bsd, (1, 0, 2))          # back to [S, B, D]


def _reference(h_sbd, wq, wkv, wo, gamma, beta, *, n_head, d_head, eps=1e-5):
    # Pure-JAX reference mirroring the PyTorch forward (mems=None, no mask, eval).
    S, B, D = h_sbd.shape
    scale = 1.0 / (d_head ** 0.5)
    head_q = jnp.einsum('ibm,hm->ibh', h_sbd, wq).reshape(S, B, n_head, d_head)
    kv = jnp.einsum('jbm,hm->jbh', h_sbd, wkv)
    head_k, head_v = kv[..., :d_head], kv[..., d_head:]
    score = jnp.einsum('ibnd,jbd->ijbn', head_q, head_k) * scale
    prob = jax.nn.softmax(score, axis=1)
    vec = jnp.einsum('ijbn,jbd->ibnd', prob, head_v).reshape(S, B, n_head * d_head)
    attn_out = jnp.einsum('ibh,mh->ibm', vec, wo)
    x = h_sbd + attn_out
    mu = jnp.mean(x, axis=-1, keepdims=True)
    var = jnp.mean((x - mu) ** 2, axis=-1, keepdims=True)
    return (x - mu) * jax.lax.rsqrt(var + eps) * gamma + beta


if __name__ == "__main__":
    # Small, module-consistent shapes.
    n_head, d_model, d_head = 2, 32, 16
    seq_len, batch = 8, 2

    key = jax.random.PRNGKey(0)
    k_h, k_q, k_kv, k_o = jax.random.split(key, 4)

    h = jax.random.normal(k_h, (seq_len, batch, d_model), dtype=jnp.float32)
    # Deterministic synthetic parameters (match nn.Linear weight shapes, no bias).
    wq = jax.random.normal(k_q, (n_head * d_head, d_model), dtype=jnp.float32) * 0.05
    wkv = jax.random.normal(k_kv, (2 * d_head, d_model), dtype=jnp.float32) * 0.05
    wo = jax.random.normal(k_o, (d_model, n_head * d_head), dtype=jnp.float32) * 0.05
    gamma = jnp.ones((d_model,), dtype=jnp.float32)
    beta = jnp.zeros((d_model,), dtype=jnp.float32)

    ref = _reference(h, wq, wkv, wo, gamma, beta, n_head=n_head, d_head=d_head)

    # f32 path (compute dtype inherited from h): exact softmax normalization.
    out = multi_query_attn(h, wq, wkv, wo, gamma, beta, n_head=n_head, d_head=d_head)
    out = jax.block_until_ready(out)
    assert out.shape == (seq_len, batch, d_model)
    assert jnp.max(jnp.abs(out - ref)) < 2e-3, float(jnp.max(jnp.abs(out - ref)))

    # bf16 compute path (the intended MXU operand configuration on v5e/v6e/v7x).
    out_bf16 = multi_query_attn(h, wq, wkv, wo, gamma, beta, n_head=n_head,
                                d_head=d_head, compute_dtype=jnp.bfloat16)
    out_bf16 = jax.block_until_ready(out_bf16)
    assert jnp.max(jnp.abs(out_bf16 - ref)) < 5e-2, float(jnp.max(jnp.abs(out_bf16 - ref)))

    print("KERNEL_OK")
</pallas_src>

<mosaic_0001>
module attributes {stable_mosaic.version = 11 : i64} {
  func.func @_mqa_kernel(%arg0: i32, %arg1: i32, %arg2: memref<1x8x32xf32, #tpu.memory_space<vmem>>, %arg3: memref<32x32xf32, #tpu.memory_space<vmem>>, %arg4: memref<32x32xf32, #tpu.memory_space<vmem>>, %arg5: memref<32x32xf32, #tpu.memory_space<vmem>>, %arg6: memref<1x32xf32, #tpu.memory_space<vmem>>, %arg7: memref<1x32xf32, #tpu.memory_space<vmem>>, %arg8: memref<1x8x32xf32, #tpu.memory_space<vmem>>, %arg9: memref<8x32xf32, #tpu.memory_space<vmem>>, %arg10: memref<8x32xf32, #tpu.memory_space<vmem>>) attributes {dimension_semantics = [#tpu.dimension_semantics<parallel>, #tpu.dimension_semantics<parallel>], iteration_bounds = array<i64: 2, 1>, scalar_prefetch = 0 : i64, scratch_operands = 2 : i64, tpu.core_type = #tpu.core_type<tc>, window_params = [{transform_indices = @transform_0, window_bounds = array<i64: 1, 8, 32>}, {pipeline_mode = #tpu.pipeline_mode<synchronous>, transform_indices = @transform_1, window_bounds = array<i64: 32, 32>}, {pipeline_mode = #tpu.pipeline_mode<synchronous>, transform_indices = @transform_2, window_bounds = array<i64: 32, 32>}, {pipeline_mode = #tpu.pipeline_mode<synchronous>, transform_indices = @transform_3, window_bounds = array<i64: 32, 32>}, {pipeline_mode = #tpu.pipeline_mode<synchronous>, transform_indices = @transform_4, window_bounds = array<i64: 1, 32>}, {pipeline_mode = #tpu.pipeline_mode<synchronous>, transform_indices = @transform_5, window_bounds = array<i64: 1, 32>}, {transform_indices = @transform_6, window_bounds = array<i64: 1, 8, 32>}]} {
    %c0 = arith.constant 0 : index
    %c0_0 = arith.constant 0 : index
    %c0_1 = arith.constant 0 : index
    %0 = vector.load %arg2[%c0, %c0_0, %c0_1] : memref<1x8x32xf32, #tpu.memory_space<vmem>>, vector<1x8x32xf32>
    %1 = vector.shape_cast %0 : vector<1x8x32xf32> to vector<8x32xf32>
    %c0_2 = arith.constant 0 : index
    %c0_3 = arith.constant 0 : index
    %2 = vector.load %arg4[%c0_2, %c0_3] : memref<32x32xf32, #tpu.memory_space<vmem>>, vector<32x32xf32>
    %cst = arith.constant dense<0.000000e+00> : vector<8x32xf32>
    %3 = tpu.matmul %1, %2, %cst {dimension_numbers = #tpu.dot_dimension_numbers<[1], [0], [0], [1], [0, 0, 1, 1], [], []>} : vector<8x32xf32>, vector<32x32xf32>, vector<8x32xf32> -> vector<8x32xf32>
    %c0_4 = arith.constant 0 : index
    %c0_5 = arith.constant 0 : index
    %4 = vector.load %arg9[%c0_4, %c0_5] : memref<8x32xf32, #tpu.memory_space<vmem>>, vector<8x32xf32>
    tpu.vector_store %arg9[%c0_4, %c0_5], %3 {strides = array<i32>} : memref<8x32xf32, #tpu.memory_space<vmem>>, vector<8x32xf32>,
    %c0_6 = arith.constant 0 : index
    %c0_7 = arith.constant 0 : index
    %5 = vector.load %arg9[%c0_6, %c0_7] : memref<8x32xf32, #tpu.memory_space<vmem>>, vector<8x16xf32>
    %c0_8 = arith.constant 0 : index
    %c16 = arith.constant 16 : index
    %6 = vector.load %arg9[%c0_8, %c16] : memref<8x32xf32, #tpu.memory_space<vmem>>, vector<8x16xf32>
    %c8_i32 = arith.constant 8 : i32
    %7 = arith.muli %arg1, %c8_i32 : i32
    %8 = tpu.assume_multiple %7, 8 : i32
    %c0_9 = arith.constant 0 : index
    %9 = arith.index_cast %8 : i32 to index
    %c0_10 = arith.constant 0 : index
    %10 = vector.load %arg2[%c0_9, %9, %c0_10] : memref<1x8x32xf32, #tpu.memory_space<vmem>>, vector<1x8x32xf32>
    %11 = vector.shape_cast %10 : vector<1x8x32xf32> to vector<8x32xf32>
    %c0_11 = arith.constant 0 : index
    %c0_12 = arith.constant 0 : index
    %12 = vector.load %arg3[%c0_11, %c0_12] : memref<32x32xf32, #tpu.memory_space<vmem>>, vector<32x32xf32>
    %cst_13 = arith.constant dense<0.000000e+00> : vector<8x32xf32>
    %13 = tpu.matmul %11, %12, %cst_13 {dimension_numbers = #tpu.dot_dimension_numbers<[1], [0], [0], [1], [0, 0, 1, 1], [], []>} : vector<8x32xf32>, vector<32x32xf32>, vector<8x32xf32> -> vector<8x32xf32>
    %14 = vector.extract_strided_slice %13 {offsets = [0, 0], sizes = [8, 16], strides = [1, 1]} : vector<8x32xf32> to vector<8x16xf32>
    %cst_14 = arith.constant dense<0.000000e+00> : vector<8x8xf32>
    %15 = tpu.matmul %14, %5, %cst_14 {dimension_numbers = #tpu.dot_dimension_numbers<[1], [1], [0], [0], [0, 0, 1, 0], [], []>} : vector<8x16xf32>, vector<8x16xf32>, vector<8x8xf32> -> vector<8x8xf32>
    %cst_15 = arith.constant dense<0xFF800000> : vector<8xf32>
    %16 = vector.multi_reduction <maximumf>, %15, %cst_15 [1] : vector<8x8xf32> to vector<8xf32>
    %17 = vector.shape_cast %16 : vector<8xf32> to vector<8x1xf32>
    %18 = vector.broadcast %17 : vector<8x1xf32> to vector<8x8xf32>
    %19 = arith.subf %15, %18 : vector<8x8xf32>
    %20 = math.exp %19 : vector<8x8xf32>
    %cst_16 = arith.constant dense<0.000000e+00> : vector<8xf32>
    %21 = vector.multi_reduction <add>, %20, %cst_16 [1] : vector<8x8xf32> to vector<8xf32>
    %22 = vector.shape_cast %21 : vector<8xf32> to vector<8x1xf32>
    %cst_17 = arith.constant dense<0.000000e+00> : vector<8x16xf32>
    %23 = tpu.matmul %20, %6, %cst_17 {dimension_numbers = #tpu.dot_dimension_numbers<[1], [0], [0], [1], [0, 0, 1, 1], [], []>} : vector<8x8xf32>, vector<8x16xf32>, vector<8x16xf32> -> vector<8x16xf32>
    %24 = vector.broadcast %22 : vector<8x1xf32> to vector<8x16xf32>
    %25 = arith.divf %23, %24 : vector<8x16xf32>
    %c0_18 = arith.constant 0 : index
    %c0_19 = arith.constant 0 : index
    %26 = vector.load %arg10[%c0_18, %c0_19] : memref<8x32xf32, #tpu.memory_space<vmem>>, vector<8x16xf32>
    tpu.vector_store %arg10[%c0_18, %c0_19], %25 {strides = array<i32>} : memref<8x32xf32, #tpu.memory_space<vmem>>, vector<8x16xf32>,
    %27 = vector.extract_strided_slice %13 {offsets = [0, 16], sizes = [8, 16], strides = [1, 1]} : vector<8x32xf32> to vector<8x16xf32>
    %cst_20 = arith.constant dense<0.000000e+00> : vector<8x8xf32>
    %28 = tpu.matmul %27, %5, %cst_20 {dimension_numbers = #tpu.dot_dimension_numbers<[1], [1], [0], [0], [0, 0, 1, 0], [], []>} : vector<8x16xf32>, vector<8x16xf32>, vector<8x8xf32> -> vector<8x8xf32>
    %cst_21 = arith.constant dense<0xFF800000> : vector<8xf32>
    %29 = vector.multi_reduction <maximumf>, %28, %cst_21 [1] : vector<8x8xf32> to vector<8xf32>
    %30 = vector.shape_cast %29 : vector<8xf32> to vector<8x1xf32>
    %31 = vector.broadcast %30 : vector<8x1xf32> to vector<8x8xf32>
    %32 = arith.subf %28, %31 : vector<8x8xf32>
    %33 = math.exp %32 : vector<8x8xf32>
    %cst_22 = arith.constant dense<0.000000e+00> : vector<8xf32>
    %34 = vector.multi_reduction <add>, %33, %cst_22 [1] : vector<8x8xf32> to vector<8xf32>
    %35 = vector.shape_cast %34 : vector<8xf32> to vector<8x1xf32>
    %cst_23 = arith.constant dense<0.000000e+00> : vector<8x16xf32>
    %36 = tpu.matmul %33, %6, %cst_23 {dimension_numbers = #tpu.dot_dimension_numbers<[1], [0], [0], [1], [0, 0, 1, 1], [], []>} : vector<8x8xf32>, vector<8x16xf32>, vector<8x16xf32> -> vector<8x16xf32>
    %37 = vector.broadcast %35 : vector<8x1xf32> to vector<8x16xf32>
    %38 = arith.divf %36, %37 : vector<8x16xf32>
    %c0_24 = arith.constant 0 : index
    %c16_25 = arith.constant 16 : index
    %39 = vector.load %arg10[%c0_24, %c16_25] : memref<8x32xf32, #tpu.memory_space<vmem>>, vector<8x16xf32>
    tpu.vector_store %arg10[%c0_24, %c16_25], %38 {strides = array<i32>} : memref<8x32xf32, #tpu.memory_space<vmem>>, vector<8x16xf32>,
    %c0_26 = arith.constant 0 : index
    %c0_27 = arith.constant 0 : index
    %40 = vector.load %arg10[%c0_26, %c0_27] : memref<8x32xf32, #tpu.memory_space<vmem>>, vector<8x32xf32>
    %c0_28 = arith.constant 0 : index
    %c0_29 = arith.constant 0 : index
    %41 = vector.load %arg5[%c0_28, %c0_29] : memref<32x32xf32, #tpu.memory_space<vmem>>, vector<32x32xf32>
    %cst_30 = arith.constant dense<0.000000e+00> : vector<8x32xf32>
    %42 = tpu.matmul %40, %41, %cst_30 {dimension_numbers = #tpu.dot_dimension_numbers<[1], [0], [0], [1], [0, 0, 1, 1], [], []>} : vector<8x32xf32>, vector<32x32xf32>, vector<8x32xf32> -> vector<8x32xf32>
    %43 = arith.addf %11, %42 : vector<8x32xf32>
    %cst_31 = arith.constant dense<0.000000e+00> : vector<8xf32>
    %44 = vector.multi_reduction <add>, %43, %cst_31 [1] : vector<8x32xf32> to vector<8xf32>
    %45 = vector.shape_cast %44 : vector<8xf32> to vector<8x1xf32>
    %cst_32 = arith.constant 3.200000e+01 : f32
    %46 = vector.broadcast %cst_32 : f32 to vector<8x1xf32>
    %47 = arith.divf %45, %46 : vector<8x1xf32>
    %48 = vector.broadcast %47 : vector<8x1xf32> to vector<8x32xf32>
    %49 = arith.subf %43, %48 : vector<8x32xf32>
    %50 = arith.mulf %49, %49 : vector<8x32xf32>
    %cst_33 = arith.constant dense<0.000000e+00> : vector<8xf32>
    %51 = vector.multi_reduction <add>, %50, %cst_33 [1] : vector<8x32xf32> to vector<8xf32>
    %52 = vector.shape_cast %51 : vector<8xf32> to vector<8x1xf32>
    %cst_34 = arith.constant 3.200000e+01 : f32
    %53 = vector.broadcast %cst_34 : f32 to vector<8x1xf32>
    %54 = arith.divf %52, %53 : vector<8x1xf32>
    %cst_35 = arith.constant 9.99999974E-6 : f32
    %55 = vector.broadcast %cst_35 : f32 to vector<8x1xf32>
    %56 = arith.addf %54, %55 : vector<8x1xf32>
    %57 = math.rsqrt %56 : vector<8x1xf32>
    %58 = vector.broadcast %57 : vector<8x1xf32> to vector<8x32xf32>
    %59 = arith.mulf %49, %58 : vector<8x32xf32>
    %c0_36 = arith.constant 0 : index
    %c0_37 = arith.constant 0 : index
    %60 = vector.load %arg6[%c0_36, %c0_37] : memref<1x32xf32, #tpu.memory_space<vmem>>, vector<1x32xf32>
    %61 = vector.broadcast %60 : vector<1x32xf32> to vector<8x32xf32>
    %62 = arith.mulf %59, %61 : vector<8x32xf32>
    %c0_38 = arith.constant 0 : index
    %c0_39 = arith.constant 0 : index
    %63 = vector.load %arg7[%c0_38, %c0_39] : memref<1x32xf32, #tpu.memory_space<vmem>>, vector<1x32xf32>
    %64 = vector.broadcast %63 : vector<1x32xf32> to vector<8x32xf32>
    %65 = arith.addf %62, %64 : vector<8x32xf32>
    %c0_40 = arith.constant 0 : index
    %c0_41 = arith.constant 0 : index
    %c0_42 = arith.constant 0 : index
    %66 = vector.load %arg8[%c0_40, %c0_41, %c0_42] : memref<1x8x32xf32, #tpu.memory_space<vmem>>, vector<1x8x32xf32>
    %67 = vector.shape_cast %66 : vector<1x8x32xf32> to vector<8x32xf32>
    %68 = vector.shape_cast %65 : vector<8x32xf32> to vector<1x8x32xf32>
    tpu.vector_store %arg8[%c0_40, %c0_41, %c0_42], %68 {strides = array<i32>} : memref<1x8x32xf32, #tpu.memory_space<vmem>>, vector<1x8x32xf32>,
    return
  }
  func.func @transform_0(%arg0: i32, %arg1: i32) -> (i32, i32, i32) {
    %c0_i32 = arith.constant 0 : i32
    %c0_i32_0 = arith.constant 0 : i32
    %c0_i32_1 = arith.constant 0 : i32
    return %arg0, %c0_i32, %c0_i32_0 : i32, i32, i32
  }
  func.func @transform_1(%arg0: i32, %arg1: i32) -> (i32, i32) {
    %c0_i32 = arith.constant 0 : i32
    %c0_i32_0 = arith.constant 0 : i32
    %c0_i32_1 = arith.constant 0 : i32
    return %c0_i32, %c0_i32_0 : i32, i32
  }
  func.func @transform_2(%arg0: i32, %arg1: i32) -> (i32, i32) {
    %c0_i32 = arith.constant 0 : i32
    %c0_i32_0 = arith.constant 0 : i32
    %c0_i32_1 = arith.constant 0 : i32
    return %c0_i32, %c0_i32_0 : i32, i32
  }
  func.func @transform_3(%arg0: i32, %arg1: i32) -> (i32, i32) {
    %c0_i32 = arith.constant 0 : i32
    %c0_i32_0 = arith.constant 0 : i32
    %c0_i32_1 = arith.constant 0 : i32
    return %c0_i32, %c0_i32_0 : i32, i32
  }
  func.func @transform_4(%arg0: i32, %arg1: i32) -> (i32, i32) {
    %c0_i32 = arith.constant 0 : i32
    %c0_i32_0 = arith.constant 0 : i32
    %c0_i32_1 = arith.constant 0 : i32
    return %c0_i32, %c0_i32_0 : i32, i32
  }
  func.func @transform_5(%arg0: i32, %arg1: i32) -> (i32, i32) {
    %c0_i32 = arith.constant 0 : i32
    %c0_i32_0 = arith.constant 0 : i32
    %c0_i32_1 = arith.constant 0 : i32
    return %c0_i32, %c0_i32_0 : i32, i32
  }
  func.func @transform_6(%arg0: i32, %arg1: i32) -> (i32, i32, i32) {
    %c0_i32 = arith.constant 0 : i32
    %c0_i32_0 = arith.constant 0 : i32
    return %arg0, %arg1, %c0_i32 : i32, i32, i32
  }
}

</mosaic_0001>

<llo_original>
// kernel: tpu_custom_call.1
$region0: #{tpu_custom_call.1}
  #allocation0 [shape = 'u32[]', space=smem, size = 0x4, offset = 0x4, fixed_abs, tag = 'smem constant byte address 0x4 - core index']
  #allocation1 [shape = 'u32[144,128]{1,0:T(1,128)}', space=vmem, size = 0x12000, scoped, tag = 'internal scratch']
  #allocation2 [shape = 'f32[8,32]{1,0:T(8,128)}', space=vmem, size = 0x1000, scoped, tag = 'scratch operand']
  #allocation3 [shape = 'f32[8,32]{1,0:T(8,128)}', space=vmem, size = 0x1000, scoped, tag = 'scratch operand']
  %s0 = inlined_call_operand.hbm [shape: f32[2,8,32], index: 0, kind: input, shape index: {}]
  %s1 = inlined_call_operand.hbm [shape: f32[32,32], index: 1, kind: input, shape index: {}]
  %s2 = inlined_call_operand.hbm [shape: f32[32,32], index: 2, kind: input, shape index: {}]
  %s3 = inlined_call_operand.hbm [shape: f32[32,32], index: 3, kind: input, shape index: {}]
  %s4 = inlined_call_operand.vmem [shape: f32[1,32], index: 4, kind: input, shape index: {}]
  %s5 = inlined_call_operand.vmem [shape: f32[1,32], index: 5, kind: input, shape index: {}]
  %s6 = inlined_call_operand.hbm [shape: f32[2,8,32], index: 6, kind: output, shape index: {}]
  %s7 = sld [smem:[#allocation0]]
  $region73: #{tpu_custom_call.1} parent=0
    _
  %s9 = ssub.s32 1, %s7
  %s10 = scalar_select 0, %s9, %s7
  $region1: #{tpu_custom_call.1} parent=0
    #allocation4 [shape = 'u8[8192]{0}', space=vmem, size = 0x2000, scoped, tag = 'input window, operand 0']
    #allocation5 [shape = 's32[2]{0}', space=sflag, size = 0x8, scoped, tag = 'scoped memory for tpu_custom_call.1']
    #allocation6 [shape = 's32[2]{0}', space=sflag, size = 0x8, scoped, tag = 'scoped memory for tpu_custom_call.1']
    #allocation7 [shape = 'u8[16384]{0}', space=vmem, size = 0x4000, scoped, tag = 'input window, operand 1, single buffered']
    #allocation8 [shape = 's32[1]{0}', space=sflag, size = 0x4, scoped, tag = 'scoped memory for tpu_custom_call.1']
    #allocation9 [shape = 'u8[16384]{0}', space=vmem, size = 0x4000, scoped, tag = 'input window, operand 2, single buffered']
    #allocation10 [shape = 'u8[16384]{0}', space=vmem, size = 0x4000, scoped, tag = 'input window, operand 3, single buffered']
    #allocation11 [shape = 's32[1]{0}', space=sflag, size = 0x4, scoped, tag = 'scoped memory for tpu_custom_call.1']
    #allocation12 [shape = 'u8[8192]{0}', space=vmem, size = 0x2000, scoped, tag = 'output window, operand 0']
    %11 = vsyncpa [#allocation5], 0
    %s12 = scalar_lea.sflag [#allocation5], 1
    %13 = vsyncpa %s12, 0
    %14 = vsyncpa [#allocation8], 0
    %15 = vsyncpa [#allocation11], 0
    %16 = vsyncpa [#allocation6], 0
    %s17 = scalar_lea.sflag [#allocation6], 1
    %18 = vsyncpa %s17, 0
    loop: start=0, step=1, limit=4
    $region2: #{tpu_custom_call.1} parent=1 // loop_pre_header
      _
    $region3: #{tpu_custom_call.1} parent=1 // loop_header
      %s20 = sphi 0, %s24
      %p21 = scmp.ge.s32.totalorder %s20, 4
      %s27 = sphi 0, %s39
      %s28 = sphi 0, %s35
      %s29 = sphi 0, %s27
      %s30 = sphi 0, %s28
      %s31 = sphi 0, %s29
      %s32 = sphi 0, %s30
      %s42 = sphi 0, %s44
      %s45 = sphi 0, %s42
      %s46 = sphi 0, %s45
      %s62 = sphi 0, %s46
      %s66 = sphi 0, %s66
      %s68 = sphi 0, %s66
      %s69 = sphi 0, %s68
      %s83 = sphi 0, %s69
      %s87 = sphi 0, %s87
      %s89 = sphi 0, %s87
      %s90 = sphi 0, %s89
      %s104 = sphi 0, %s90
      %s108 = sphi 0, %s108
      %s110 = sphi 0, %s108
      %s111 = sphi 0, %s110
      %s125 = sphi 0, %s111
      %s129 = sphi 0, %s129
      %s131 = sphi 0, %s129
      %s132 = sphi 0, %s131
      %s146 = sphi 0, %s132
      %s150 = sphi 0, %s150
      %s152 = sphi 0, %s150
      %s153 = sphi 0, %s152
      %s167 = sphi 0, %s153
      %s175 = sphi 0, %s177
      %s178 = sphi 0, %s175
      %s179 = sphi 0, %s178
      %s195 = sphi 0, %s179
    $region4: #{tpu_custom_call.1} parent=1 // loop_header_branch
      %23 = sbr.rel (%p21) target = $region8
    $region5: #{tpu_custom_call.1} parent=1 // loop_body
      %s25 = ssub.s32 %s20, 1
      %s26 = ssub.s32 %s20, 2
      %s33 = sadd.s32 1, %s28
      %p34 = scmp.ge.s32.totalorder %s33, 1
      %s35 = scalar_select %p34, 0, %s33
      %s36 = sadd.s32 1, %s27
      %s37 = scalar_select %p34, %s36, %s27
      %p38 = scmp.ge.s32.totalorder %s37, 2
      %s39 = scalar_select %p38, 0, %s37
      %s40 = ssub.s32 %s27, %s39
      %p41 = scmp.eq.s32.totalorder %s40, 0
      %s43 = sadd.s32 %s42, 1
      %s44 = scalar_select %p41, %s42, %s43
      %p47 = pneg %p41
      %p48 = scmp.eq.s32.totalorder %s20, 1
      %p49 = por %p47, %p48
      %p50 = scmp.ne.s32.totalorder %s42, %s45
      %p51 = scmp.eq.s32.totalorder %s20, 0
      %p52 = por %p50, %p51
      %p53 = scmp.ne.s32.totalorder %s42, %s45
      %p54 = scmp.eq.s32.totalorder %s25, 1
      %p55 = por %p53, %p54
      %p56 = scmp.ne.s32.totalorder %s45, %s46
      %p57 = scmp.eq.s32.totalorder %s25, 0
      %p58 = por %p56, %p57
      %p59 = scmp.ne.s32.totalorder %s45, %s46
      %p60 = scmp.eq.s32.totalorder %s26, 1
      %p61 = por %p59, %p60
      %p63 = scmp.ne.s32.totalorder %s46, %s62
      %p64 = scmp.eq.s32.totalorder %s26, 0
      %p65 = por %p63, %p64
      %s67 = sadd.s32 %s66, 1
      %p70 = scmp.eq.s32.totalorder %s20, 1
      %p71 = scmp.ne.s32.totalorder %s66, %s68
      %p72 = scmp.eq.s32.totalorder %s20, 0
      %p73 = por %p71, %p72
      %p74 = scmp.ne.s32.totalorder %s66, %s68
      %p75 = scmp.eq.s32.totalorder %s25, 1
      %p76 = por %p74, %p75
      %p77 = scmp.ne.s32.totalorder %s68, %s69
      %p78 = scmp.eq.s32.totalorder %s25, 0
      %p79 = por %p77, %p78
      %p80 = scmp.ne.s32.totalorder %s68, %s69
      %p81 = scmp.eq.s32.totalorder %s26, 1
      %p82 = por %p80, %p81
      %p84 = scmp.ne.s32.totalorder %s69, %s83
      %p85 = scmp.eq.s32.totalorder %s26, 0
      %p86 = por %p84, %p85
      %s88 = sadd.s32 %s87, 1
      %p91 = scmp.eq.s32.totalorder %s20, 1
      %p92 = scmp.ne.s32.totalorder %s87, %s89
      %p93 = scmp.eq.s32.totalorder %s20, 0
      %p94 = por %p92, %p93
      %p95 = scmp.ne.s32.totalorder %s87, %s89
      %p96 = scmp.eq.s32.totalorder %s25, 1
      %p97 = por %p95, %p96
      %p98 = scmp.ne.s32.totalorder %s89, %s90
      %p99 = scmp.eq.s32.totalorder %s25, 0
      %p100 = por %p98, %p99
      %p101 = scmp.ne.s32.totalorder %s89, %s90
      %p102 = scmp.eq.s32.totalorder %s26, 1
      %p103 = por %p101, %p102
      %p105 = scmp.ne.s32.totalorder %s90, %s104
      %p106 = scmp.eq.s32.totalorder %s26, 0
      %p107 = por %p105, %p106
      %s109 = sadd.s32 %s108, 1
      %p112 = scmp.eq.s32.totalorder %s20, 1
      %p113 = scmp.ne.s32.totalorder %s108, %s110
      %p114 = scmp.eq.s32.totalorder %s20, 0
      %p115 = por %p113, %p114
      %p116 = scmp.ne.s32.totalorder %s108, %s110
      %p117 = scmp.eq.s32.totalorder %s25, 1
      %p118 = por %p116, %p117
      %p119 = scmp.ne.s32.totalorder %s110, %s111
      %p120 = scmp.eq.s32.totalorder %s25, 0
      %p121 = por %p119, %p120
      %p122 = scmp.ne.s32.totalorder %s110, %s111
      %p123 = scmp.eq.s32.totalorder %s26, 1
      %p124 = por %p122, %p123
      %p126 = scmp.ne.s32.totalorder %s111, %s125
      %p127 = scmp.eq.s32.totalorder %s26, 0
      %p128 = por %p126, %p127
      %s130 = sadd.s32 %s129, 1
      %p133 = scmp.eq.s32.totalorder %s20, 1
      %p134 = scmp.ne.s32.totalorder %s129, %s131
      %p135 = scmp.eq.s32.totalorder %s20, 0
      %p136 = por %p134, %p135
      %p137 = scmp.ne.s32.totalorder %s129, %s131
      %p138 = scmp.eq.s32.totalorder %s25, 1
      %p139 = por %p137, %p138
      %p140 = scmp.ne.s32.totalorder %s131, %s132
      %p141 = scmp.eq.s32.totalorder %s25, 0
      %p142 = por %p140, %p141
      %p143 = scmp.ne.s32.totalorder %s131, %s132
      %p144 = scmp.eq.s32.totalorder %s26, 1
      %p145 = por %p143, %p144
      %p147 = scmp.ne.s32.totalorder %s132, %s146
      %p148 = scmp.eq.s32.totalorder %s26, 0
      %p149 = por %p147, %p148
      %s151 = sadd.s32 %s150, 1
      %p154 = scmp.eq.s32.totalorder %s20, 1
      %p155 = scmp.ne.s32.totalorder %s150, %s152
      %p156 = scmp.eq.s32.totalorder %s20, 0
      %p157 = por %p155, %p156
      %p158 = scmp.ne.s32.totalorder %s150, %s152
      %p159 = scmp.eq.s32.totalorder %s25, 1
      %p160 = por %p158, %p159
      %p161 = scmp.ne.s32.totalorder %s152, %s153
      %p162 = scmp.eq.s32.totalorder %s25, 0
      %p163 = por %p161, %p162
      %p164 = scmp.ne.s32.totalorder %s152, %s153
      %p165 = scmp.eq.s32.totalorder %s26, 1
      %p166 = por %p164, %p165
      %p168 = scmp.ne.s32.totalorder %s153, %s167
      %p169 = scmp.eq.s32.totalorder %s26, 0
      %p170 = por %p168, %p169
      %s171 = ssub.s32 %s27, %s39
      %s172 = ssub.s32 %s28, %s35
      %s173 = sor.u32 %s171, %s172
      %p174 = scmp.eq.s32.totalorder %s173, 0
      %s176 = sadd.s32 %s175, 1
      %s177 = scalar_select %p174, %s175, %s176
      %p180 = pneg %p174
      %p181 = scmp.eq.s32.totalorder %s20, 1
      %p182 = por %p180, %p181
      %p183 = scmp.ne.s32.totalorder %s175, %s178
      %p184 = scmp.eq.s32.totalorder %s20, 0
      %p185 = por %p183, %p184
      %p186 = scmp.ne.s32.totalorder %s175, %s178
      %p187 = scmp.eq.s32.totalorder %s25, 1
      %p188 = por %p186, %p187
      %p189 = scmp.ne.s32.totalorder %s178, %s179
      %p190 = scmp.eq.s32.totalorder %s25, 0
      %p191 = por %p189, %p190
      %p192 = scmp.ne.s32.totalorder %s178, %s179
      %p193 = scmp.eq.s32.totalorder %s26, 1
      %p194 = por %p192, %p193
      %p196 = scmp.ne.s32.totalorder %s179, %s195
      %p197 = scmp.eq.s32.totalorder %s26, 0
      %p198 = por %p196, %p197
      %p199 = scmp.le.s32.totalorder 1, %s20
      %p200 = scmp.lt.s32.totalorder %s20, 3
      %p201 = pnand %p199, %p200
      %p202 = pneg %p201
      // Predicated region
      $region9: #{tpu_custom_call.1} parent=5 // pred_check
        _
      $region10: #{tpu_custom_call.1} parent=5 // pred_check_branch
        %204 = sbr.rel (%p201) target = $region12
      $region11: #{tpu_custom_call.1} parent=5 // pred_region
        %s205 = ssub.s32 %s20, 1
        // Predicated region
        $region13: #{tpu_custom_call.1} parent=11 // pred_check
          %p206 = pneg %p79
        $region14: #{tpu_custom_call.1} parent=11 // pred_check_branch
          %208 = sbr.rel (%p206) target = $region16
        $region15: #{tpu_custom_call.1} parent=11 // pred_region
          %s210 = ssub.s32 512, 512
          %211 = vsyncadd [#allocation8], %s210
          %s212 = sshll.u32 [#allocation7], 4
          %s213 = int_to_ptr.vmem [resolvable:$true] %s212
          %218 = dma.hbm_to_vmem [thread:$0]  %s1, 512, %s213, [#allocation8], 128, 128, 8
        $region16: #{tpu_custom_call.1} parent=11 // pred_fallthru
          _
        // Predicated region
        $region17: #{tpu_custom_call.1} parent=11 // pred_check
          %p219 = pneg %p100
        $region18: #{tpu_custom_call.1} parent=11 // pred_check_branch
          %221 = sbr.rel (%p219) target = $region20
        $region19: #{tpu_custom_call.1} parent=11 // pred_region
          %s223 = ssub.s32 512, 512
          %224 = vsyncadd [#allocation8], %s223
          %s225 = sshll.u32 [#allocation9], 4
          %s226 = int_to_ptr.vmem [resolvable:$true] %s225
          %231 = dma.hbm_to_vmem [thread:$0]  %s2, 512, %s226, [#allocation8], 128, 128, 8
        $region20: #{tpu_custom_call.1} parent=11 // pred_fallthru
          _
        // Predicated region
        $region21: #{tpu_custom_call.1} parent=11 // pred_check
          %p232 = pneg %p121
        $region22: #{tpu_custom_call.1} parent=11 // pred_check_branch
          %234 = sbr.rel (%p232) target = $region24
        $region23: #{tpu_custom_call.1} parent=11 // pred_region
          %s236 = ssub.s32 512, 512
          %237 = vsyncadd [#allocation11], %s236
          %s238 = sshll.u32 [#allocation10], 4
          %s239 = int_to_ptr.vmem [resolvable:$true] %s238
          %244 = dma.hbm_to_vmem [thread:$0]  %s3, 512, %s239, [#allocation11], 128, 128, 8
        $region24: #{tpu_custom_call.1} parent=11 // pred_fallthru
          _
        // Predicated region
        $region25: #{tpu_custom_call.1} parent=11 // pred_check
          %p245 = pneg %p142
        $region26: #{tpu_custom_call.1} parent=11 // pred_check_branch
          %247 = sbr.rel (%p245) target = $region28
        $region27: #{tpu_custom_call.1} parent=11 // pred_region
          _
        $region28: #{tpu_custom_call.1} parent=11 // pred_fallthru
          _
        // Predicated region
        $region29: #{tpu_custom_call.1} parent=11 // pred_check
          %p248 = pneg %p163
        $region30: #{tpu_custom_call.1} parent=11 // pred_check_branch
          %250 = sbr.rel (%p248) target = $region32
        $region31: #{tpu_custom_call.1} parent=11 // pred_region
          _
        $region32: #{tpu_custom_call.1} parent=11 // pred_fallthru
          _
      $region12: #{tpu_custom_call.1} parent=5 // pred_fallthru
        _
      %p251 = scmp.lt.s32.totalorder %s20, 2
      // Predicated region
      $region33: #{tpu_custom_call.1} parent=5 // pred_check
        %p252 = pneg %p251
      $region34: #{tpu_custom_call.1} parent=5 // pred_check_branch
        %254 = sbr.rel (%p252) target = $region36
      $region35: #{tpu_custom_call.1} parent=5 // pred_region
        // Predicated region
        $region37: #{tpu_custom_call.1} parent=35 // pred_check
          %p255 = pneg %p52
        $region38: #{tpu_custom_call.1} parent=35 // pred_check_branch
          %257 = sbr.rel (%p255) target = $region40
        $region39: #{tpu_custom_call.1} parent=35 // pred_region
          %s258 = sand.u32 %s42, 1
          %s259 = scalar_lea.sflag [#allocation5], %s258
          %s260 = sand.u32 %s42, 1
          %s261 = smul.addr %s260, 8
          %s262 = scalar_lea.vmem [#allocation4], %s261
          %s264 = ssub.s32 128, 128
          %265 = vsyncadd %s259, %s264
          %s266 = smul.addr %s27, 128
          %s267 = scalar_lea.hbm %s0, %s266
          %s269 = sshll.u32 %s262, 4
          %s270 = int_to_ptr.vmem [resolvable:$true] %s269
          %272 = dma.hbm_to_vmem [thread:$0]  %s267, 128, %s270, %s259
        $region40: #{tpu_custom_call.1} parent=35 // pred_fallthru
          _
      $region36: #{tpu_custom_call.1} parent=5 // pred_fallthru
        _
      %p273 = scmp.le.s32.totalorder 1, %s20
      %p274 = scmp.lt.s32.totalorder %s20, 3
      %p275 = pnand %p273, %p274
      %p276 = pneg %p275
      // Predicated region
      $region41: #{tpu_custom_call.1} parent=5 // pred_check
        _
      $region42: #{tpu_custom_call.1} parent=5 // pred_check_branch
        %278 = sbr.rel (%p275) target = $region44
      $region43: #{tpu_custom_call.1} parent=5 // pred_region
        %s279 = ssub.s32 %s20, 1
        %s280 = sand.u32 %s45, 1
        %s281 = scalar_lea.sflag [#allocation5], %s280
        %s282 = sand.u32 %s45, 1
        %s283 = smul.addr %s282, 8
        %s284 = scalar_lea.vmem [#allocation4], %s283
        // Predicated region
        $region45: #{tpu_custom_call.1} parent=43 // pred_check
          %p285 = pneg %p58
        $region46: #{tpu_custom_call.1} parent=43 // pred_check_branch
          %287 = sbr.rel (%p285) target = $region48
        $region47: #{tpu_custom_call.1} parent=43 // pred_region
          %288 = dma.done %s281, 128
        $region48: #{tpu_custom_call.1} parent=43 // pred_fallthru
          _
        // Predicated region
        $region49: #{tpu_custom_call.1} parent=43 // pred_check
          %p289 = pneg %p79
        $region50: #{tpu_custom_call.1} parent=43 // pred_check_branch
          %291 = sbr.rel (%p289) target = $region52
        $region51: #{tpu_custom_call.1} parent=43 // pred_region
          %292 = dma.done [#allocation8], 512
        $region52: #{tpu_custom_call.1} parent=43 // pred_fallthru
          _
        // Predicated region
        $region53: #{tpu_custom_call.1} parent=43 // pred_check
          %p293 = pneg %p100
        $region54: #{tpu_custom_call.1} parent=43 // pred_check_branch
          %295 = sbr.rel (%p293) target = $region56
        $region55: #{tpu_custom_call.1} parent=43 // pred_region
          %296 = dma.done [#allocation8], 512
        $region56: #{tpu_custom_call.1} parent=43 // pred_fallthru
          _
        // Predicated region
        $region57: #{tpu_custom_call.1} parent=43 // pred_check
          %p297 = pneg %p121
        $region58: #{tpu_custom_call.1} parent=43 // pred_check_branch
          %299 = sbr.rel (%p297) target = $region60
        $region59: #{tpu_custom_call.1} parent=43 // pred_region
          %300 = dma.done [#allocation11], 512
        $region60: #{tpu_custom_call.1} parent=43 // pred_fallthru
          _
        %s301 = sand.u32 %s45, 1
        %s302 = scalar_lea.sflag [#allocation5], %s301
        %s303 = sand.u32 %s45, 1
        %s304 = smul.addr %s303, 8
        %s305 = scalar_lea.vmem [#allocation4], %s304
        %p306 = pneg %p58
        %p307 = pneg %p55
        %p308 = pneg %p79
        %p309 = pneg %p76
        %p310 = pneg %p100
        %p311 = pneg %p97
        %p312 = pneg %p121
        %p313 = pneg %p118
        %p314 = pneg %p142
        %p315 = pneg %p139
        %p316 = pneg %p163
        %p317 = pneg %p160
        %p318 = pneg %p191
        %p319 = pneg %p188
        %s320 = sand.u32 %s178, 1
        %s321 = scalar_lea.sflag [#allocation6], %s320
        %s322 = sand.u32 %s178, 1
        %s323 = smul.addr %s322, 8
        %s324 = scalar_lea.vmem [#allocation12], %s323
        %v325 = vld [vmem:[%s284] sm:$0xff]
        %v326 = vld [vmem:[#allocation9] sm:$0xff]
        %v327 = vld [vmem:[#allocation9 + $0x8] sm:$0xff]
        %v328 = vld [vmem:[#allocation9 + $0x10] sm:$0xff]
        %v329 = vld [vmem:[#allocation9 + $0x18] sm:$0xff]
        %vm330 = vcmask 261120
        %v332 = vsel %vm330, %v325, 0
        %334 = vmatprep.subr.mxu0 0.0
        %335 = vmatpush1.msra.mxu0 %v326
        %336 = vmatprep.subr.mxu0 0.0
        %337 = vmatpush1.msra.mxu0 %v327
        %338 = vmatprep.subr.mxu0 0.0
        %339 = vmatpush1.msra.mxu0 %v328
        %340 = vmatprep.subr.mxu0 0.0
        %341 = vmatpush1.msra.mxu0 %v329
        %342 = vmatprep.subr.mxu0 0.0
        %343 = vmatpush1.msra.mxu0 0.0
        %344 = vmatprep.subr.mxu0 0.0
        %345 = vmatpush1.msra.mxu0 0.0
        %346 = vmatprep.subr.mxu0 0.0
        %347 = vmatpush1.msra.mxu0 0.0
        %348 = vmatprep.subr.mxu0 0.0
        %349 = vmatpush1.msra.mxu0 0.0
        %350 = vmatprep.subr.mxu0 0.0
        %351 = vmatpush1.msra.mxu0 0.0
        %352 = vmatprep.subr.mxu0 0.0
        %353 = vmatpush1.msra.mxu0 0.0
        %354 = vmatprep.subr.mxu0 0.0
        %355 = vmatpush1.msra.mxu0 0.0
        %356 = vmatprep.subr.mxu0 0.0
        %357 = vmatpush1.msra.mxu0 0.0
        %358 = vmatprep.subr.mxu0 0.0
        %359 = vmatpush1.msra.mxu0 0.0
        %360 = vmatprep.subr.mxu0 0.0
        %361 = vmatpush1.msra.mxu0 0.0
        %362 = vmatprep.subr.mxu0 0.0
        %363 = vmatpush1.msra.mxu0 0.0
        %364 = vmatprep.subr.mxu0 0.0
        %365 = vmatpush1.msra.mxu0 0.0
        %366 = vmatprep.subr.mxu0 0.0
        %367 = vmatpush1.msra.mxu0 0.0
        %368 = vmatprep.subr.mxu0 0.0
        %369 = vmatpush1.msra.mxu0 0.0
        %370 = vmatprep.subr.mxu0 0.0
        %371 = vmatpush1.msra.mxu0 0.0
        %372 = vmatprep.subr.mxu0 0.0
        %373 = vmatpush1.msra.mxu0 0.0
        %374 = vmatprep.subr.mxu0 0.0
        %375 = vmatpush1.msra.mxu0 0.0
        %376 = vmatprep.subr.mxu0 0.0
        %377 = vmatpush1.msra.mxu0 0.0
        %378 = vmatprep.subr.mxu0 0.0
        %379 = vmatpush1.msra.mxu0 0.0
        %380 = vmatprep.subr.mxu0 0.0
        %381 = vmatpush1.msra.mxu0 0.0
        %382 = vmatprep.subr.mxu0 0.0
        %383 = vmatpush1.msra.mxu0 0.0
        %384 = vmatprep.subr.mxu0 0.0
        %385 = vmatpush1.msra.mxu0 0.0
        %386 = vmatprep.subr.mxu0 0.0
        %387 = vmatpush1.msra.mxu0 0.0
        %388 = vmatprep.subr.mxu0 0.0
        %389 = vmatpush1.msra.mxu0 0.0
        %390 = vmatprep.subr.mxu0 0.0
        %391 = vmatpush1.msra.mxu0 0.0
        %392 = vmatprep.subr.mxu0 0.0
        %393 = vmatpush1.msra.mxu0 0.0
        %394 = vmatprep.subr.mxu0 0.0
        %395 = vmatpush1.msra.mxu0 0.0
        %396 = vmatprep.subr.mxu0 0.0
        %397 = vmatpush1.msra.mxu0 0.0
        %398 = vmatprep.mubr.f32.mxu0 0.0
        %399 = vmatmul.mubr.f32.gmra.mrb[0].mxu0 %v332
        %v400 = vpop.f32.mrb[0].mxu0
        %v401 = vadd.f32 0.0, %v400
        %v402 = vpop.f32.mrb[0].mxu0
        %403 = vdwg.mxu0
        %404 = vst.msk [vmem:[#allocation2] sm:$0xff] %vm330, %v401
        %v405 = vld [vmem:[#allocation2] sm:$0xff]
        %s406 = smul.u32 %s30, 8
        %s407 = scalar_lea.vmem %s284, %s406 [#allocation4]
        %v408 = vld [vmem:[%s407] sm:$0xff]
        %v409 = vld [vmem:[#allocation7] sm:$0xff]
        %v410 = vld [vmem:[#allocation7 + $0x8] sm:$0xff]
        %v411 = vld [vmem:[#allocation7 + $0x10] sm:$0xff]
        %v412 = vld [vmem:[#allocation7 + $0x18] sm:$0xff]
        %v414 = vsel %vm330, %v408, 0
        %416 = vmatprep.subr.mxu0 0.0
        %417 = vmatpush1.msra.mxu0 %v409
        %418 = vmatprep.subr.mxu0 0.0
        %419 = vmatpush1.msra.mxu0 %v410
        %420 = vmatprep.subr.mxu0 0.0
        %421 = vmatpush1.msra.mxu0 %v411
        %422 = vmatprep.subr.mxu0 0.0
        %423 = vmatpush1.msra.mxu0 %v412
        %424 = vmatprep.subr.mxu0 0.0
        %425 = vmatpush1.msra.mxu0 0.0
        %426 = vmatprep.subr.mxu0 0.0
        %427 = vmatpush1.msra.mxu0 0.0
        %428 = vmatprep.subr.mxu0 0.0
        %429 = vmatpush1.msra.mxu0 0.0
        %430 = vmatprep.subr.mxu0 0.0
        %431 = vmatpush1.msra.mxu0 0.0
        %432 = vmatprep.subr.mxu0 0.0
        %433 = vmatpush1.msra.mxu0 0.0
        %434 = vmatprep.subr.mxu0 0.0
        %435 = vmatpush1.msra.mxu0 0.0
        %436 = vmatprep.subr.mxu0 0.0
        %437 = vmatpush1.msra.mxu0 0.0
        %438 = vmatprep.subr.mxu0 0.0
        %439 = vmatpush1.msra.mxu0 0.0
        %440 = vmatprep.subr.mxu0 0.0
        %441 = vmatpush1.msra.mxu0 0.0
        %442 = vmatprep.subr.mxu0 0.0
        %443 = vmatpush1.msra.mxu0 0.0
        %444 = vmatprep.subr.mxu0 0.0
        %445 = vmatpush1.msra.mxu0 0.0
        %446 = vmatprep.subr.mxu0 0.0
        %447 = vmatpush1.msra.mxu0 0.0
        %448 = vmatprep.subr.mxu0 0.0
        %449 = vmatpush1.msra.mxu0 0.0
        %450 = vmatprep.subr.mxu0 0.0
        %451 = vmatpush1.msra.mxu0 0.0
        %452 = vmatprep.subr.mxu0 0.0
        %453 = vmatpush1.msra.mxu0 0.0
        %454 = vmatprep.subr.mxu0 0.0
        %455 = vmatpush1.msra.mxu0 0.0
        %456 = vmatprep.subr.mxu0 0.0
        %457 = vmatpush1.msra.mxu0 0.0
        %458 = vmatprep.subr.mxu0 0.0
        %459 = vmatpush1.msra.mxu0 0.0
        %460 = vmatprep.subr.mxu0 0.0
        %461 = vmatpush1.msra.mxu0 0.0
        %462 = vmatprep.subr.mxu0 0.0
        %463 = vmatpush1.msra.mxu0 0.0
        %464 = vmatprep.subr.mxu0 0.0
        %465 = vmatpush1.msra.mxu0 0.0
        %466 = vmatprep.subr.mxu0 0.0
        %467 = vmatpush1.msra.mxu0 0.0
        %468 = vmatprep.subr.mxu0 0.0
        %469 = vmatpush1.msra.mxu0 0.0
        %470 = vmatprep.subr.mxu0 0.0
        %471 = vmatpush1.msra.mxu0 0.0
        %472 = vmatprep.subr.mxu0 0.0
        %473 = vmatpush1.msra.mxu0 0.0
        %474 = vmatprep.subr.mxu0 0.0
        %475 = vmatpush1.msra.mxu0 0.0
        %476 = vmatprep.subr.mxu0 0.0
        %477 = vmatpush1.msra.mxu0 0.0
        %478 = vmatprep.subr.mxu0 0.0
        %479 = vmatpush1.msra.mxu0 0.0
        %480 = vmatprep.mubr.f32.mxu0 0.0
        %481 = vmatmul.mubr.f32.gmra.mrb[0].mxu0 %v414
        %v482 = vpop.f32.mrb[0].mxu0
        %v483 = vadd.f32 0.0, %v482
        %v484 = vpop.f32.mrb[0].mxu0
        %485 = vdwg.mxu0
        %vm486 = vcmask 130048
        %v488 = vsel %vm486, %v483, 0
        %v491 = vsel %vm486, %v405, 0
        %493 = vmatprep.subr.mxu0 0.0
        %494 = vmatpush1.xpose.msra.mxu0 %v491
        %495 = vmatprep.subr.mxu0 0.0
        %496 = vmatpush1.xpose.msra.mxu0 0.0
        %497 = vmatprep.subr.mxu0 0.0
        %498 = vmatpush1.xpose.msra.mxu0 0.0
        %499 = vmatprep.subr.mxu0 0.0
        %500 = vmatpush1.xpose.msra.mxu0 0.0
        %501 = vmatprep.subr.mxu0 0.0
        %502 = vmatpush1.xpose.msra.mxu0 0.0
        %503 = vmatprep.subr.mxu0 0.0
        %504 = vmatpush1.xpose.msra.mxu0 0.0
        %505 = vmatprep.subr.mxu0 0.0
        %506 = vmatpush1.xpose.msra.mxu0 0.0
        %507 = vmatprep.subr.mxu0 0.0
        %508 = vmatpush1.xpose.msra.mxu0 0.0
        %509 = vmatprep.subr.mxu0 0.0
        %510 = vmatpush1.xpose.msra.mxu0 0.0
        %511 = vmatprep.subr.mxu0 0.0
        %512 = vmatpush1.xpose.msra.mxu0 0.0
        %513 = vmatprep.subr.mxu0 0.0
        %514 = vmatpush1.xpose.msra.mxu0 0.0
        %515 = vmatprep.subr.mxu0 0.0
        %516 = vmatpush1.xpose.msra.mxu0 0.0
        %517 = vmatprep.subr.mxu0 0.0
        %518 = vmatpush1.xpose.msra.mxu0 0.0
        %519 = vmatprep.subr.mxu0 0.0
        %520 = vmatpush1.xpose.msra.mxu0 0.0
        %521 = vmatprep.subr.mxu0 0.0
        %522 = vmatpush1.xpose.msra.mxu0 0.0
        %523 = vmatprep.subr.mxu0 0.0
        %524 = vmatpush1.xpose.msra.mxu0 0.0
        %525 = vmatprep.subr.mxu0 0.0
        %526 = vmatpush1.xpose.msra.mxu0 0.0
        %527 = vmatprep.subr.mxu0 0.0
        %528 = vmatpush1.xpose.msra.mxu0 0.0
        %529 = vmatprep.subr.mxu0 0.0
        %530 = vmatpush1.xpose.msra.mxu0 0.0
        %531 = vmatprep.subr.mxu0 0.0
        %532 = vmatpush1.xpose.msra.mxu0 0.0
        %533 = vmatprep.subr.mxu0 0.0
        %534 = vmatpush1.xpose.msra.mxu0 0.0
        %535 = vmatprep.subr.mxu0 0.0
        %536 = vmatpush1.xpose.msra.mxu0 0.0
        %537 = vmatprep.subr.mxu0 0.0
        %538 = vmatpush1.xpose.msra.mxu0 0.0
        %539 = vmatprep.subr.mxu0 0.0
        %540 = vmatpush1.xpose.msra.mxu0 0.0
        %541 = vmatprep.subr.mxu0 0.0
        %542 = vmatpush1.xpose.msra.mxu0 0.0
        %543 = vmatprep.subr.mxu0 0.0
        %544 = vmatpush1.xpose.msra.mxu0 0.0
        %545 = vmatprep.subr.mxu0 0.0
        %546 = vmatpush1.xpose.msra.mxu0 0.0
        %547 = vmatprep.subr.mxu0 0.0
        %548 = vmatpush1.xpose.msra.mxu0 0.0
        %549 = vmatprep.subr.mxu0 0.0
        %550 = vmatpush1.xpose.msra.mxu0 0.0
        %551 = vmatprep.subr.mxu0 0.0
        %552 = vmatpush1.xpose.msra.mxu0 0.0
        %553 = vmatprep.subr.mxu0 0.0
        %554 = vmatpush1.xpose.msra.mxu0 0.0
        %555 = vmatprep.subr.mxu0 0.0
        %556 = vmatpush1.xpose.msra.mxu0 0.0
        %557 = vmatprep.mubr.f32.mxu0 0.0
        %558 = vmatmul.mubr.f32.gmra.mrb[0].mxu0 %v488
        %v559 = vpop.f32.mrb[0].mxu0
        %v560 = vadd.f32 0.0, %v559
        %v561 = vpop.f32.mrb[0].mxu0
        %562 = vdwg.mxu0
        %vm563 = vcmask 64512
        %v564 = vsel %vm563, %v560, -inf
        %565 = vmax.xlane.f32.xlu0 %v564
        %v566 = vpop.xlane.xlu0 %565
        %v567 = vsub.f32 %v560, %v566
        %v568 = vmul.f32 %v567, 1.442695
        %v569 = vpow.pop %v568
        %v570 = vsel %vm563, %v569, 0.0
        %571 = vadd.xlane.f32.xlu0 %v570
        %v572 = vpop.xlane.xlu0 %571
        %573 = vrot.lane.b32.xlu0 %v405, 112
        %v574 = vpop.permute.xlu0 %573
        %v577 = vsel %vm563, %v569, 0
        %579 = vmatprep.subr.mxu0 0.0
        %580 = vmatpush1.msra.mxu0 %v574
        %581 = vmatprep.subr.mxu0 0.0
        %582 = vmatpush1.msra.mxu0 0.0
        %583 = vmatprep.subr.mxu0 0.0
        %584 = vmatpush1.msra.mxu0 0.0
        %585 = vmatprep.subr.mxu0 0.0
        %586 = vmatpush1.msra.mxu0 0.0
        %587 = vmatprep.subr.mxu0 0.0
        %588 = vmatpush1.msra.mxu0 0.0
        %589 = vmatprep.subr.mxu0 0.0
        %590 = vmatpush1.msra.mxu0 0.0
        %591 = vmatprep.subr.mxu0 0.0
        %592 = vmatpush1.msra.mxu0 0.0
        %593 = vmatprep.subr.mxu0 0.0
        %594 = vmatpush1.msra.mxu0 0.0
        %595 = vmatprep.subr.mxu0 0.0
        %596 = vmatpush1.msra.mxu0 0.0
        %597 = vmatprep.subr.mxu0 0.0
        %598 = vmatpush1.msra.mxu0 0.0
        %599 = vmatprep.subr.mxu0 0.0
        %600 = vmatpush1.msra.mxu0 0.0
        %601 = vmatprep.subr.mxu0 0.0
        %602 = vmatpush1.msra.mxu0 0.0
        %603 = vmatprep.subr.mxu0 0.0
        %604 = vmatpush1.msra.mxu0 0.0
        %605 = vmatprep.subr.mxu0 0.0
        %606 = vmatpush1.msra.mxu0 0.0
        %607 = vmatprep.subr.mxu0 0.0
        %608 = vmatpush1.msra.mxu0 0.0
        %609 = vmatprep.subr.mxu0 0.0
        %610 = vmatpush1.msra.mxu0 0.0
        %611 = vmatprep.subr.mxu0 0.0
        %612 = vmatpush1.msra.mxu0 0.0
        %613 = vmatprep.subr.mxu0 0.0
        %614 = vmatpush1.msra.mxu0 0.0
        %615 = vmatprep.subr.mxu0 0.0
        %616 = vmatpush1.msra.mxu0 0.0
        %617 = vmatprep.subr.mxu0 0.0
        %618 = vmatpush1.msra.mxu0 0.0
        %619 = vmatprep.subr.mxu0 0.0
        %620 = vmatpush1.msra.mxu0 0.0
        %621 = vmatprep.subr.mxu0 0.0
        %622 = vmatpush1.msra.mxu0 0.0
        %623 = vmatprep.subr.mxu0 0.0
        %624 = vmatpush1.msra.mxu0 0.0
        %625 = vmatprep.subr.mxu0 0.0
        %626 = vmatpush1.msra.mxu0 0.0
        %627 = vmatprep.subr.mxu0 0.0
        %628 = vmatpush1.msra.mxu0 0.0
        %629 = vmatprep.subr.mxu0 0.0
        %630 = vmatpush1.msra.mxu0 0.0
        %631 = vmatprep.subr.mxu0 0.0
        %632 = vmatpush1.msra.mxu0 0.0
        %633 = vmatprep.subr.mxu0 0.0
        %634 = vmatpush1.msra.mxu0 0.0
        %635 = vmatprep.subr.mxu0 0.0
        %636 = vmatpush1.msra.mxu0 0.0
        %637 = vmatprep.subr.mxu0 0.0
        %638 = vmatpush1.msra.mxu0 0.0
        %639 = vmatprep.subr.mxu0 0.0
        %640 = vmatpush1.msra.mxu0 0.0
        %641 = vmatprep.subr.mxu0 0.0
        %642 = vmatpush1.msra.mxu0 0.0
        %643 = vmatprep.mubr.f32.mxu0 0.0
        %644 = vmatmul.mubr.f32.gmra.mrb[0].mxu0 %v577
        %v645 = vpop.f32.mrb[0].mxu0
        %v646 = vadd.f32 0.0, %v645
        %v647 = vpop.f32.mrb[0].mxu0
        %648 = vdwg.mxu0
        %v649 = vrcp.pop %v572
        %v650 = vmul.f32 %v646, %v649
        %651 = vst.msk [vmem:[#allocation3] sm:$0xff] %vm486, %v650
        %652 = vrot.lane.b32.xlu0 %v483, 112
        %v653 = vpop.permute.xlu0 %652
        %v654 = vsel %vm486, %v653, 0
        %656 = vmatprep.subr.mxu0 0.0
        %657 = vmatpush1.xpose.msra.mxu0 %v491
        %658 = vmatprep.subr.mxu0 0.0
        %659 = vmatpush1.xpose.msra.mxu0 0.0
        %660 = vmatprep.subr.mxu0 0.0
        %661 = vmatpush1.xpose.msra.mxu0 0.0
        %662 = vmatprep.subr.mxu0 0.0
        %663 = vmatpush1.xpose.msra.mxu0 0.0
        %664 = vmatprep.subr.mxu0 0.0
        %665 = vmatpush1.xpose.msra.mxu0 0.0
        %666 = vmatprep.subr.mxu0 0.0
        %667 = vmatpush1.xpose.msra.mxu0 0.0
        %668 = vmatprep.subr.mxu0 0.0
        %669 = vmatpush1.xpose.msra.mxu0 0.0
        %670 = vmatprep.subr.mxu0 0.0
        %671 = vmatpush1.xpose.msra.mxu0 0.0
        %672 = vmatprep.subr.mxu0 0.0
        %673 = vmatpush1.xpose.msra.mxu0 0.0
        %674 = vmatprep.subr.mxu0 0.0
        %675 = vmatpush1.xpose.msra.mxu0 0.0
        %676 = vmatprep.subr.mxu0 0.0
        %677 = vmatpush1.xpose.msra.mxu0 0.0
        %678 = vmatprep.subr.mxu0 0.0
        %679 = vmatpush1.xpose.msra.mxu0 0.0
        %680 = vmatprep.subr.mxu0 0.0
        %681 = vmatpush1.xpose.msra.mxu0 0.0
        %682 = vmatprep.subr.mxu0 0.0
        %683 = vmatpush1.xpose.msra.mxu0 0.0
        %684 = vmatprep.subr.mxu0 0.0
        %685 = vmatpush1.xpose.msra.mxu0 0.0
        %686 = vmatprep.subr.mxu0 0.0
        %687 = vmatpush1.xpose.msra.mxu0 0.0
        %688 = vmatprep.subr.mxu0 0.0
        %689 = vmatpush1.xpose.msra.mxu0 0.0
        %690 = vmatprep.subr.mxu0 0.0
        %691 = vmatpush1.xpose.msra.mxu0 0.0
        %692 = vmatprep.subr.mxu0 0.0
        %693 = vmatpush1.xpose.msra.mxu0 0.0
        %694 = vmatprep.subr.mxu0 0.0
        %695 = vmatpush1.xpose.msra.mxu0 0.0
        %696 = vmatprep.subr.mxu0 0.0
        %697 = vmatpush1.xpose.msra.mxu0 0.0
        %698 = vmatprep.subr.mxu0 0.0
        %699 = vmatpush1.xpose.msra.mxu0 0.0
        %700 = vmatprep.subr.mxu0 0.0
        %701 = vmatpush1.xpose.msra.mxu0 0.0
        %702 = vmatprep.subr.mxu0 0.0
        %703 = vmatpush1.xpose.msra.mxu0 0.0
        %704 = vmatprep.subr.mxu0 0.0
        %705 = vmatpush1.xpose.msra.mxu0 0.0
        %706 = vmatprep.subr.mxu0 0.0
        %707 = vmatpush1.xpose.msra.mxu0 0.0
        %708 = vmatprep.subr.mxu0 0.0
        %709 = vmatpush1.xpose.msra.mxu0 0.0
        %710 = vmatprep.subr.mxu0 0.0
        %711 = vmatpush1.xpose.msra.mxu0 0.0
        %712 = vmatprep.subr.mxu0 0.0
        %713 = vmatpush1.xpose.msra.mxu0 0.0
        %714 = vmatprep.subr.mxu0 0.0
        %715 = vmatpush1.xpose.msra.mxu0 0.0
        %716 = vmatprep.subr.mxu0 0.0
        %717 = vmatpush1.xpose.msra.mxu0 0.0
        %718 = vmatprep.subr.mxu0 0.0
        %719 = vmatpush1.xpose.msra.mxu0 0.0
        %720 = vmatprep.mubr.f32.mxu0 0.0
        %721 = vmatmul.mubr.f32.gmra.mrb[0].mxu0 %v654
        %v722 = vpop.f32.mrb[0].mxu0
        %v723 = vadd.f32 0.0, %v722
        %v724 = vpop.f32.mrb[0].mxu0
        %725 = vdwg.mxu0
        %v726 = vsel %vm563, %v723, -inf
        %727 = vmax.xlane.f32.xlu0 %v726
        %v728 = vpop.xlane.xlu0 %727
        %v729 = vsub.f32 %v723, %v728
        %v730 = vmul.f32 %v729, 1.442695
        %v731 = vpow.pop %v730
        %v732 = vsel %vm563, %v731, 0.0
        %733 = vadd.xlane.f32.xlu0 %v732
        %v734 = vpop.xlane.xlu0 %733
        %v736 = vsel %vm563, %v731, 0
        %738 = vmatprep.subr.mxu0 0.0
        %739 = vmatpush1.msra.mxu0 %v574
        %740 = vmatprep.subr.mxu0 0.0
        %741 = vmatpush1.msra.mxu0 0.0
        %742 = vmatprep.subr.mxu0 0.0
        %743 = vmatpush1.msra.mxu0 0.0
        %744 = vmatprep.subr.mxu0 0.0
        %745 = vmatpush1.msra.mxu0 0.0
        %746 = vmatprep.subr.mxu0 0.0
        %747 = vmatpush1.msra.mxu0 0.0
        %748 = vmatprep.subr.mxu0 0.0
        %749 = vmatpush1.msra.mxu0 0.0
        %750 = vmatprep.subr.mxu0 0.0
        %751 = vmatpush1.msra.mxu0 0.0
        %752 = vmatprep.subr.mxu0 0.0
        %753 = vmatpush1.msra.mxu0 0.0
        %754 = vmatprep.subr.mxu0 0.0
        %755 = vmatpush1.msra.mxu0 0.0
        %756 = vmatprep.subr.mxu0 0.0
        %757 = vmatpush1.msra.mxu0 0.0
        %758 = vmatprep.subr.mxu0 0.0
        %759 = vmatpush1.msra.mxu0 0.0
        %760 = vmatprep.subr.mxu0 0.0
        %761 = vmatpush1.msra.mxu0 0.0
        %762 = vmatprep.subr.mxu0 0.0
        %763 = vmatpush1.msra.mxu0 0.0
        %764 = vmatprep.subr.mxu0 0.0
        %765 = vmatpush1.msra.mxu0 0.0
        %766 = vmatprep.subr.mxu0 0.0
        %767 = vmatpush1.msra.mxu0 0.0
        %768 = vmatprep.subr.mxu0 0.0
        %769 = vmatpush1.msra.mxu0 0.0
        %770 = vmatprep.subr.mxu0 0.0
        %771 = vmatpush1.msra.mxu0 0.0
        %772 = vmatprep.subr.mxu0 0.0
        %773 = vmatpush1.msra.mxu0 0.0
        %774 = vmatprep.subr.mxu0 0.0
        %775 = vmatpush1.msra.mxu0 0.0
        %776 = vmatprep.subr.mxu0 0.0
        %777 = vmatpush1.msra.mxu0 0.0
        %778 = vmatprep.subr.mxu0 0.0
        %779 = vmatpush1.msra.mxu0 0.0
        %780 = vmatprep.subr.mxu0 0.0
        %781 = vmatpush1.msra.mxu0 0.0
        %782 = vmatprep.subr.mxu0 0.0
        %783 = vmatpush1.msra.mxu0 0.0
        %784 = vmatprep.subr.mxu0 0.0
        %785 = vmatpush1.msra.mxu0 0.0
        %786 = vmatprep.subr.mxu0 0.0
        %787 = vmatpush1.msra.mxu0 0.0
        %788 = vmatprep.subr.mxu0 0.0
        %789 = vmatpush1.msra.mxu0 0.0
        %790 = vmatprep.subr.mxu0 0.0
        %791 = vmatpush1.msra.mxu0 0.0
        %792 = vmatprep.subr.mxu0 0.0
        %793 = vmatpush1.msra.mxu0 0.0
        %794 = vmatprep.subr.mxu0 0.0
        %795 = vmatpush1.msra.mxu0 0.0
        %796 = vmatprep.subr.mxu0 0.0
        %797 = vmatpush1.msra.mxu0 0.0
        %798 = vmatprep.subr.mxu0 0.0
        %799 = vmatpush1.msra.mxu0 0.0
        %800 = vmatprep.subr.mxu0 0.0
        %801 = vmatpush1.msra.mxu0 0.0
        %802 = vmatprep.mubr.f32.mxu0 0.0
        %803 = vmatmul.mubr.f32.gmra.mrb[0].mxu0 %v736
        %v804 = vpop.f32.mrb[0].mxu0
        %v805 = vadd.f32 0.0, %v804
        %v806 = vpop.f32.mrb[0].mxu0
        %807 = vdwg.mxu0
        %v808 = vrcp.pop %v734
        %v809 = vmul.f32 %v805, %v808
        %811 = vrot.lane.b32.xlu0 %v809, 16
        %v812 = vpop.permute.xlu0 %811
        %vm814 = vcmask 261248
        %815 = vst.msk [vmem:[#allocation3] sm:$0xff] %vm814, %v812
        %v816 = vld [vmem:[#allocation3] sm:$0xff]
        %v817 = vld [vmem:[#allocation10] sm:$0xff]
        %v818 = vld [vmem:[#allocation10 + $0x8] sm:$0xff]
        %v819 = vld [vmem:[#allocation10 + $0x10] sm:$0xff]
        %v820 = vld [vmem:[#allocation10 + $0x18] sm:$0xff]
        %v822 = vsel %vm330, %v816, 0
        %824 = vmatprep.subr.mxu0 0.0
        %825 = vmatpush1.msra.mxu0 %v817
        %826 = vmatprep.subr.mxu0 0.0
        %827 = vmatpush1.msra.mxu0 %v818
        %828 = vmatprep.subr.mxu0 0.0
        %829 = vmatpush1.msra.mxu0 %v819
        %830 = vmatprep.subr.mxu0 0.0
        %831 = vmatpush1.msra.mxu0 %v820
        %832 = vmatprep.subr.mxu0 0.0
        %833 = vmatpush1.msra.mxu0 0.0
        %834 = vmatprep.subr.mxu0 0.0
        %835 = vmatpush1.msra.mxu0 0.0
        %836 = vmatprep.subr.mxu0 0.0
        %837 = vmatpush1.msra.mxu0 0.0
        %838 = vmatprep.subr.mxu0 0.0
        %839 = vmatpush1.msra.mxu0 0.0
        %840 = vmatprep.subr.mxu0 0.0
        %841 = vmatpush1.msra.mxu0 0.0
        %842 = vmatprep.subr.mxu0 0.0
        %843 = vmatpush1.msra.mxu0 0.0
        %844 = vmatprep.subr.mxu0 0.0
        %845 = vmatpush1.msra.mxu0 0.0
        %846 = vmatprep.subr.mxu0 0.0
        %847 = vmatpush1.msra.mxu0 0.0
        %848 = vmatprep.subr.mxu0 0.0
        %849 = vmatpush1.msra.mxu0 0.0
        %850 = vmatprep.subr.mxu0 0.0
        %851 = vmatpush1.msra.mxu0 0.0
        %852 = vmatprep.subr.mxu0 0.0
        %853 = vmatpush1.msra.mxu0 0.0
        %854 = vmatprep.subr.mxu0 0.0
        %855 = vmatpush1.msra.mxu0 0.0
        %856 = vmatprep.subr.mxu0 0.0
        %857 = vmatpush1.msra.mxu0 0.0
        %858 = vmatprep.subr.mxu0 0.0
        %859 = vmatpush1.msra.mxu0 0.0
        %860 = vmatprep.subr.mxu0 0.0
        %861 = vmatpush1.msra.mxu0 0.0
        %862 = vmatprep.subr.mxu0 0.0
        %863 = vmatpush1.msra.mxu0 0.0
        %864 = vmatprep.subr.mxu0 0.0
        %865 = vmatpush1.msra.mxu0 0.0
        %866 = vmatprep.subr.mxu0 0.0
        %867 = vmatpush1.msra.mxu0 0.0
        %868 = vmatprep.subr.mxu0 0.0
        %869 = vmatpush1.msra.mxu0 0.0
        %870 = vmatprep.subr.mxu0 0.0
        %871 = vmatpush1.msra.mxu0 0.0
        %872 = vmatprep.subr.mxu0 0.0
        %873 = vmatpush1.msra.mxu0 0.0
        %874 = vmatprep.subr.mxu0 0.0
        %875 = vmatpush1.msra.mxu0 0.0
        %876 = vmatprep.subr.mxu0 0.0
        %877 = vmatpush1.msra.mxu0 0.0
        %878 = vmatprep.subr.mxu0 0.0
        %879 = vmatpush1.msra.mxu0 0.0
        %880 = vmatprep.subr.mxu0 0.0
        %881 = vmatpush1.msra.mxu0 0.0
        %882 = vmatprep.subr.mxu0 0.0
        %883 = vmatpush1.msra.mxu0 0.0
        %884 = vmatprep.subr.mxu0 0.0
        %885 = vmatpush1.msra.mxu0 0.0
        %886 = vmatprep.subr.mxu0 0.0
        %887 = vmatpush1.msra.mxu0 0.0
        %888 = vmatprep.mubr.f32.mxu0 0.0
        %889 = vmatmul.mubr.f32.gmra.mrb[0].mxu0 %v822
        %v890 = vpop.f32.mrb[0].mxu0
        %v891 = vadd.f32 0.0, %v890
        %v892 = vpop.f32.mrb[0].mxu0
        %893 = vdwg.mxu0
        %v894 = vadd.f32 %v408, %v891
        %v895 = vsel %vm330, %v894, 0.0
        %896 = vadd.xlane.f32.xlu0 %v895
        %v897 = vpop.xlane.xlu0 %896
        %v898 = vrcp.pop 32.0
        %v899 = vmul.f32 %v897, %v898
        %v900 = vsub.f32 %v894, %v899
        %v901 = vmul.f32 %v900, %v900
        %v902 = vsel %vm330, %v901, 0.0
        %903 = vadd.xlane.f32.xlu0 %v902
        %v904 = vpop.xlane.xlu0 %903
        %v905 = vmul.f32 %v904, %v898
        %v906 = vadd.f32 %v905, 1e-05
        %v907 = vrsqrt.pop %v906
        %v908 = vmul.f32 %v900, %v907
        %v909 = vld [vmem:[%s4] sm:$0x1]
        %v911 = vlaneseq
        %v912 = vshrl.u32 %v911, 7
        %v913 = vsub.s32 0, %v912
        %v914 = vrot.slane %v909, %v913
        %v916 = vmul.f32 %v908, %v914
        %v917 = vld [vmem:[%s5] sm:$0x1]
        %v919 = vlaneseq
        %v920 = vshrl.u32 %v919, 7
        %v921 = vsub.s32 0, %v920
        %v922 = vrot.slane %v917, %v921
        %v924 = vadd.f32 %v916, %v922
        %925 = vst.msk [vmem:[%s324] sm:$0xff] %vm330, %v924
        %s926 = sand.u32 %s178, 1
        %s927 = scalar_lea.sflag [#allocation6], %s926
        %s928 = sand.u32 %s178, 1
        %s929 = smul.addr %s928, 8
        %s930 = scalar_lea.vmem [#allocation12], %s929
        // Predicated region
        $region61: #{tpu_custom_call.1} parent=43 // pred_check
          %p931 = pneg %p188
        $region62: #{tpu_custom_call.1} parent=43 // pred_check_branch
          %933 = sbr.rel (%p931) target = $region64
        $region63: #{tpu_custom_call.1} parent=43 // pred_region
          %s935 = ssub.s32 128, 128
          %936 = vsyncadd %s927, %s935
          %s937 = sadd.s32 %s30, %s29
          %s938 = smul.addr %s937, 128
          %s939 = scalar_lea.hbm %s6, %s938
          %s941 = sshll.u32 %s930, 4
          %s942 = int_to_ptr.vmem [resolvable:$true] %s941
          %944 = dma.vmem_to_hbm [thread:$0]  %s942, 128, %s939, %s927
        $region64: #{tpu_custom_call.1} parent=43 // pred_fallthru
          _
      $region44: #{tpu_custom_call.1} parent=5 // pred_fallthru
        _
      %p945 = scmp.le.s32.totalorder 2, %s20
      // Predicated region
      $region65: #{tpu_custom_call.1} parent=5 // pred_check
        %p946 = pneg %p945
      $region66: #{tpu_custom_call.1} parent=5 // pred_check_branch
        %948 = sbr.rel (%p946) target = $region68
      $region67: #{tpu_custom_call.1} parent=5 // pred_region
        %s949 = ssub.s32 %s20, 2
        // Predicated region
        $region69: #{tpu_custom_call.1} parent=67 // pred_check
          %p950 = pneg %p194
        $region70: #{tpu_custom_call.1} parent=67 // pred_check_branch
          %952 = sbr.rel (%p950) target = $region72
        $region71: #{tpu_custom_call.1} parent=67 // pred_region
          %s953 = sand.u32 %s179, 1
          %s954 = scalar_lea.sflag [#allocation6], %s953
          %s955 = sand.u32 %s179, 1
          %s956 = smul.addr %s955, 8
          %s957 = scalar_lea.vmem [#allocation12], %s956
          %958 = dma.done %s954, 128
        $region72: #{tpu_custom_call.1} parent=67 // pred_fallthru
          _
      $region68: #{tpu_custom_call.1} parent=5 // pred_fallthru
        _
    $region6: #{tpu_custom_call.1} parent=1 // loop_footer
      %s24 = sadd.s32 1, %s20
    $region7: #{tpu_custom_call.1} parent=1 // loop_footer_branch
      %19 = sbr.rel target = $region3
    $region8: #{tpu_custom_call.1} parent=1 // loop_exit
      _
    %959 = vsyncpa [#allocation5], 1
    %s960 = scalar_lea.sflag [#allocation5], 1
    %961 = vsyncpa %s960, 1
    %962 = vsyncpa [#allocation8], 1
    %963 = vsyncpa [#allocation11], 1
    %964 = vsyncpa [#allocation6], 1
    %s965 = scalar_lea.sflag [#allocation6], 1
    %966 = vsyncpa %s965, 1

</llo_original>
